<compile_context>
chip_gen: v6e
topology: v6e:2x2x1
jax: 0.10.0
libtpu: 0.0.40
codegen_flags: <defaults>
</compile_context>

<pallas_src>
import functools

import jax
import jax.numpy as jnp
from jax.experimental import pallas as pl
from jax.experimental.pallas import tpu as pltpu


def _dwconv1d_kernel(x_ref, w_ref, b_ref, o_ref, xp_ref, *,
                     K, stride, dilation, pad, off0, L, L_out, M):
    """One (batch, channel-block) tile.

    x_ref : (1, C_TILE, L)             input tile (original dtype)
    w_ref : (C_TILE*M, K)              per-output-channel taps
    b_ref : (C_TILE*M, 1)              bias
    o_ref : (1, C_TILE*M, L_out)       output tile
    xp_ref: (C_TILE*M, off0+L+pad)     f32 scratch: zero-padded input copy
    """
    cm = o_ref.shape[1]
    c_tile = x_ref.shape[1]

    # ---- build the padded (and depth-multiplied) f32 copy in VMEM ----------
    if pad > 0:
        # Left halo is over-allocated to a 128-lane-aligned offset so the main
        # data copy below is a lane-aligned store; halos are zeroed each step.
        xp_ref[:, pl.ds(0, off0)] = jnp.zeros((cm, off0), jnp.float32)
        xp_ref[:, pl.ds(off0 + L, pad)] = jnp.zeros((cm, pad), jnp.float32)

    x32 = x_ref[0].astype(jnp.float32)                        # per-tile upcast
    if M > 1:
        # output channel c*M + m reads input channel c -> replicate rows
        # M times in VMEM (never in HBM).
        x32 = jnp.broadcast_to(x32[:, None, :], (c_tile, M, L)).reshape(cm, L)
    xp_ref[:, pl.ds(off0, L)] = x32

    # ---- K-tap MAC; accumulator initialised directly from the bias ---------
    w = w_ref[...].astype(jnp.float32)                        # (cm, K)
    acc = jnp.broadcast_to(b_ref[...].astype(jnp.float32), (cm, L_out))
    for k in range(K):                                        # small static unroll
        start = off0 - pad + k * dilation
        if stride == 1:
            xk = xp_ref[:, pl.ds(start, L_out)]               # unit-stride vld
        else:
            # TODO(synk): for stride > 1, pre-split stride phases in the
            # wrapper so in-kernel loads stay unit-stride on lanes.
            xk = xp_ref[:, pl.ds(start, L_out, stride=stride)]
        acc = acc + w[:, k:k + 1] * xk
    o_ref[0] = acc.astype(o_ref.dtype)


def _choose_c_tile(C, M, L, n_batch, itemsize=4):
    """Channel tile: multiple of 8 dividing C, sized so blocks stay VMEM-small
    (v7x-safe even double-buffered), preferring >=2 grid steps when N == 1."""
    if C <= 8:
        return C
    cands = [t for t in range(8, C + 1, 8) if C % t == 0]
    if not cands:
        return C
    budget = 2 << 20                       # ~2 MiB per input block
    fit = [t for t in cands if t * M * L * itemsize <= budget]
    ct = max(fit) if fit else min(cands)
    if n_batch == 1 and ct == C:
        smaller = [t for t in cands if t < C]
        if smaller:
            ct = max(smaller)              # keep both v7x TensorCores busy
    return ct


def depthwise_conv1d(x, weight, bias=None, *, stride=1, padding="same",
                     dilation=1, depth_multiplier=1):
    """x: (N, C, L); weight: (C*M, 1, K) (PyTorch layout); bias: (C*M,) or None."""
    N, C, L = x.shape
    CM, _, K = weight.shape
    M = depth_multiplier
    assert CM == C * M

    if padding == "same":
        pad = (K - 1) // 2 * dilation      # exactly what the PyTorch module does
    else:
        pad = int(padding)

    L_out = (L + 2 * pad - dilation * (K - 1) - 1) // stride + 1
    off0 = ((pad + 127) // 128) * 128 if pad > 0 else 0   # aligned data offset
    L_scratch = off0 + L + pad

    c_tile = _choose_c_tile(C, M, L, N, itemsize=4)
    cm_tile = c_tile * M
    n_cb = C // c_tile

    w2d = weight[:, 0, :]                                  # (CM, K)
    if bias is None:
        bias = jnp.zeros((CM,), w2d.dtype)
    b2d = bias.reshape(CM, 1)                              # (CM, 1)

    kernel = functools.partial(
        _dwconv1d_kernel, K=K, stride=stride, dilation=dilation, pad=pad,
        off0=off0, L=L, L_out=L_out, M=M)

    out_dtype = x.dtype
    cost = pl.CostEstimate(
        flops=2 * N * CM * L_out * K,
        transcendentals=0,
        bytes_accessed=int(x.size * x.dtype.itemsize
                           + w2d.size * w2d.dtype.itemsize
                           + b2d.size * b2d.dtype.itemsize
                           + N * CM * L_out * jnp.dtype(out_dtype).itemsize))

    return pl.pallas_call(
        kernel,
        out_shape=jax.ShapeDtypeStruct((N, CM, L_out), out_dtype),
        grid_spec=pltpu.PrefetchScalarGridSpec(
            num_scalar_prefetch=0,
            grid=(N, n_cb),
            in_specs=[
                pl.BlockSpec((1, c_tile, L), lambda n, c: (n, c, 0)),
                pl.BlockSpec((cm_tile, K), lambda n, c: (c, 0)),
                pl.BlockSpec((cm_tile, 1), lambda n, c: (c, 0)),
            ],
            out_specs=pl.BlockSpec((1, cm_tile, L_out), lambda n, c: (n, c, 0)),
            scratch_shapes=[pltpu.VMEM((cm_tile, L_scratch), jnp.float32)],
        ),
        compiler_params=pltpu.CompilerParams(
            dimension_semantics=("parallel", "parallel")),
        cost_estimate=cost,
    )(x, w2d, b2d)


def _reference(x, weight, bias, *, stride, padding, dilation):
    K = weight.shape[-1]
    if padding == "same":
        pad = (K - 1) // 2 * dilation
    else:
        pad = int(padding)
    C = x.shape[1]
    y = jax.lax.conv_general_dilated(
        x, weight,
        window_strides=(stride,),
        padding=[(pad, pad)],
        rhs_dilation=(dilation,),
        feature_group_count=C,
        dimension_numbers=("NCH", "OIH", "NCH"),
        precision=jax.lax.Precision.HIGHEST,
    )
    return y + bias.reshape(1, -1, 1)


if __name__ == "__main__":
    # Module config: in_channels=4, kernel_size=3, depth_multiplier=1,
    # stride=1, padding='same', dilation=1, bias=True
    N, C, L = 2, 4, 16
    K = 3
    depth_multiplier = 1
    stride, padding, dilation = 1, "same", 1
    CM = C * depth_multiplier

    key = jax.random.PRNGKey(0)
    kx, kw, kb = jax.random.split(key, 3)

    x = jax.random.normal(kx, (N, C, L), dtype=jnp.float32)

    # PyTorch-style init: uniform(-1/sqrt(fan_in), 1/sqrt(fan_in)), fan_in = K
    bound = 1.0 / (K ** 0.5)
    weight = jax.random.uniform(kw, (CM, 1, K), jnp.float32, -bound, bound)
    bias = jax.random.uniform(kb, (CM,), jnp.float32, -bound, bound)

    y = depthwise_conv1d(x, weight, bias, stride=stride, padding=padding,
                         dilation=dilation, depth_multiplier=depth_multiplier)
    y = jax.block_until_ready(y)

    y_ref = _reference(x, weight, bias, stride=stride, padding=padding,
                       dilation=dilation)

    assert y.shape == y_ref.shape, (y.shape, y_ref.shape)
    err = float(jnp.max(jnp.abs(y - y_ref)))
    assert err < 1e-4, err
    print("KERNEL_OK")
</pallas_src>

<mosaic_0001>
module attributes {stable_mosaic.version = 11 : i64} {
  func.func @_dwconv1d_kernel(%arg0: i32, %arg1: i32, %arg2: memref<1x4x16xf32, #tpu.memory_space<vmem>>, %arg3: memref<4x3xf32, #tpu.memory_space<vmem>>, %arg4: memref<4x1xf32, #tpu.memory_space<vmem>>, %arg5: memref<1x4x16xf32, #tpu.memory_space<vmem>>, %arg6: memref<4x145xf32, #tpu.memory_space<vmem>>) attributes {dimension_semantics = [#tpu.dimension_semantics<parallel>, #tpu.dimension_semantics<parallel>], iteration_bounds = array<i64: 2, 1>, scalar_prefetch = 0 : i64, scratch_operands = 1 : i64, tpu.core_type = #tpu.core_type<tc>, window_params = [{transform_indices = @transform_0, window_bounds = array<i64: 1, 4, 16>}, {transform_indices = @transform_1, window_bounds = array<i64: 4, 3>}, {transform_indices = @transform_2, window_bounds = array<i64: 4, 1>}, {transform_indices = @transform_3, window_bounds = array<i64: 1, 4, 16>}]} {
    %cst = arith.constant 0.000000e+00 : f32
    %0 = vector.broadcast %cst : f32 to vector<4x128xf32>
    %c0 = arith.constant 0 : index
    %c0_0 = arith.constant 0 : index
    %1 = vector.load %arg6[%c0, %c0_0] : memref<4x145xf32, #tpu.memory_space<vmem>>, vector<4x128xf32>
    tpu.vector_store %arg6[%c0, %c0_0], %0 {strides = array<i32>} : memref<4x145xf32, #tpu.memory_space<vmem>>, vector<4x128xf32>,
    %cst_1 = arith.constant 0.000000e+00 : f32
    %2 = vector.broadcast %cst_1 : f32 to vector<4x1xf32>
    %c0_2 = arith.constant 0 : index
    %c144 = arith.constant 144 : index
    %3 = vector.load %arg6[%c0_2, %c144] : memref<4x145xf32, #tpu.memory_space<vmem>>, vector<4x1xf32>
    tpu.vector_store %arg6[%c0_2, %c144], %2 {strides = array<i32>} : memref<4x145xf32, #tpu.memory_space<vmem>>, vector<4x1xf32>,
    %c0_3 = arith.constant 0 : index
    %c0_4 = arith.constant 0 : index
    %c0_5 = arith.constant 0 : index
    %4 = vector.load %arg2[%c0_3, %c0_4, %c0_5] : memref<1x4x16xf32, #tpu.memory_space<vmem>>, vector<1x4x16xf32>
    %5 = vector.shape_cast %4 : vector<1x4x16xf32> to vector<4x16xf32>
    %c0_6 = arith.constant 0 : index
    %c128 = arith.constant 128 : index
    %6 = vector.load %arg6[%c0_6, %c128] : memref<4x145xf32, #tpu.memory_space<vmem>>, vector<4x16xf32>
    tpu.vector_store %arg6[%c0_6, %c128], %5 {strides = array<i32>} : memref<4x145xf32, #tpu.memory_space<vmem>>, vector<4x16xf32>,
    %c0_7 = arith.constant 0 : index
    %c0_8 = arith.constant 0 : index
    %7 = vector.load %arg3[%c0_7, %c0_8] : memref<4x3xf32, #tpu.memory_space<vmem>>, vector<4x3xf32>
    %c0_9 = arith.constant 0 : index
    %c0_10 = arith.constant 0 : index
    %8 = vector.load %arg4[%c0_9, %c0_10] : memref<4x1xf32, #tpu.memory_space<vmem>>, vector<4x1xf32>
    %9 = vector.shape_cast %8 : vector<4x1xf32> to vector<4x1xf32>
    %10 = vector.broadcast %9 : vector<4x1xf32> to vector<4x16xf32>
    %c0_11 = arith.constant 0 : index
    %c127 = arith.constant 127 : index
    %11 = vector.load %arg6[%c0_11, %c127] : memref<4x145xf32, #tpu.memory_space<vmem>>, vector<4x16xf32>
    %12 = vector.extract_strided_slice %7 {offsets = [0, 0], sizes = [4, 1], strides = [1, 1]} : vector<4x3xf32> to vector<4x1xf32>
    %13 = vector.broadcast %12 : vector<4x1xf32> to vector<4x16xf32>
    %14 = arith.mulf %13, %11 : vector<4x16xf32>
    %15 = arith.addf %10, %14 : vector<4x16xf32>
    %c0_12 = arith.constant 0 : index
    %c128_13 = arith.constant 128 : index
    %16 = vector.load %arg6[%c0_12, %c128_13] : memref<4x145xf32, #tpu.memory_space<vmem>>, vector<4x16xf32>
    %17 = vector.extract_strided_slice %7 {offsets = [0, 1], sizes = [4, 1], strides = [1, 1]} : vector<4x3xf32> to vector<4x1xf32>
    %18 = vector.broadcast %17 : vector<4x1xf32> to vector<4x16xf32>
    %19 = arith.mulf %18, %16 : vector<4x16xf32>
    %20 = arith.addf %15, %19 : vector<4x16xf32>
    %c0_14 = arith.constant 0 : index
    %c129 = arith.constant 129 : index
    %21 = vector.load %arg6[%c0_14, %c129] : memref<4x145xf32, #tpu.memory_space<vmem>>, vector<4x16xf32>
    %22 = vector.extract_strided_slice %7 {offsets = [0, 2], sizes = [4, 1], strides = [1, 1]} : vector<4x3xf32> to vector<4x1xf32>
    %23 = vector.broadcast %22 : vector<4x1xf32> to vector<4x16xf32>
    %24 = arith.mulf %23, %21 : vector<4x16xf32>
    %25 = arith.addf %20, %24 : vector<4x16xf32>
    %c0_15 = arith.constant 0 : index
    %c0_16 = arith.constant 0 : index
    %c0_17 = arith.constant 0 : index
    %26 = vector.load %arg5[%c0_15, %c0_16, %c0_17] : memref<1x4x16xf32, #tpu.memory_space<vmem>>, vector<1x4x16xf32>
    %27 = vector.shape_cast %26 : vector<1x4x16xf32> to vector<4x16xf32>
    %28 = vector.shape_cast %25 : vector<4x16xf32> to vector<1x4x16xf32>
    tpu.vector_store %arg5[%c0_15, %c0_16, %c0_17], %28 {strides = array<i32>} : memref<1x4x16xf32, #tpu.memory_space<vmem>>, vector<1x4x16xf32>,
    return
  }
  func.func @transform_0(%arg0: i32, %arg1: i32) -> (i32, i32, i32) {
    %c0_i32 = arith.constant 0 : i32
    %c0_i32_0 = arith.constant 0 : i32
    return %arg0, %arg1, %c0_i32 : i32, i32, i32
  }
  func.func @transform_1(%arg0: i32, %arg1: i32) -> (i32, i32) {
    %c0_i32 = arith.constant 0 : i32
    %c0_i32_0 = arith.constant 0 : i32
    return %arg1, %c0_i32 : i32, i32
  }
  func.func @transform_2(%arg0: i32, %arg1: i32) -> (i32, i32) {
    %c0_i32 = arith.constant 0 : i32
    %c0_i32_0 = arith.constant 0 : i32
    return %arg1, %c0_i32 : i32, i32
  }
  func.func @transform_3(%arg0: i32, %arg1: i32) -> (i32, i32, i32) {
    %c0_i32 = arith.constant 0 : i32
    %c0_i32_0 = arith.constant 0 : i32
    return %arg0, %arg1, %c0_i32 : i32, i32, i32
  }
}

</mosaic_0001>

<llo_original>
// kernel: tpu_custom_call.1
$region0: #{tpu_custom_call.1}
  #allocation0 [shape = 'u32[]', space=smem, size = 0x4, offset = 0x4, fixed_abs, tag = 'smem constant byte address 0x4 - core index']
  #allocation1 [shape = 'u32[144,128]{1,0:T(1,128)}', space=vmem, size = 0x12000, scoped, tag = 'internal scratch']
  #allocation2 [shape = 'f32[4,145]{1,0:T(4,128)}', space=vmem, size = 0x1000, scoped, tag = 'scratch operand']
  %s0 = inlined_call_operand.hbm [shape: f32[2,4,16], index: 0, kind: input, shape index: {}]
  %s1 = inlined_call_operand.vmem [shape: f32[4,3], index: 1, kind: input, shape index: {}]
  %s2 = inlined_call_operand.vmem [shape: f32[4,1], index: 2, kind: input, shape index: {}]
  %s3 = inlined_call_operand.hbm [shape: f32[2,4,16], index: 3, kind: output, shape index: {}]
  %s4 = sld [smem:[#allocation0]]
  $region49: #{tpu_custom_call.1} parent=0
    _
  %s6 = ssub.s32 1, %s4
  %s7 = scalar_select 0, %s6, %s4
  $region1: #{tpu_custom_call.1} parent=0
    #allocation3 [shape = 'u8[4096]{0}', space=vmem, size = 0x1000, scoped, tag = 'input window, operand 0']
    #allocation4 [shape = 's32[2]{0}', space=sflag, size = 0x8, scoped, tag = 'scoped memory for tpu_custom_call.1']
    #allocation5 [shape = 's32[2]{0}', space=sflag, size = 0x8, scoped, tag = 'scoped memory for tpu_custom_call.1']
    #allocation6 [shape = 'u8[4096]{0}', space=vmem, size = 0x1000, scoped, tag = 'output window, operand 0']
    %8 = vsyncpa [#allocation4], 0
    %s9 = scalar_lea.sflag [#allocation4], 1
    %10 = vsyncpa %s9, 0
    %11 = vsyncpa [#allocation5], 0
    %s12 = scalar_lea.sflag [#allocation5], 1
    %13 = vsyncpa %s12, 0
    loop: start=0, step=1, limit=4
    $region2: #{tpu_custom_call.1} parent=1 // loop_pre_header
      _
    $region3: #{tpu_custom_call.1} parent=1 // loop_header
      %s15 = sphi 0, %s19
      %p16 = scmp.ge.s32.totalorder %s15, 4
      %s22 = sphi 0, %s34
      %s23 = sphi 0, %s30
      %s24 = sphi 0, %s22
      %s25 = sphi 0, %s23
      %s26 = sphi 0, %s24
      %s27 = sphi 0, %s25
      %s39 = sphi 0, %s41
      %s42 = sphi 0, %s39
      %s43 = sphi 0, %s42
      %s59 = sphi 0, %s43
      %s65 = sphi 0, %s67
      %s68 = sphi 0, %s65
      %s69 = sphi 0, %s68
      %s85 = sphi 0, %s69
      %s91 = sphi 0, %s93
      %s94 = sphi 0, %s91
      %s95 = sphi 0, %s94
      %s111 = sphi 0, %s95
      %s119 = sphi 0, %s121
      %s122 = sphi 0, %s119
      %s123 = sphi 0, %s122
      %s139 = sphi 0, %s123
    $region4: #{tpu_custom_call.1} parent=1 // loop_header_branch
      %18 = sbr.rel (%p16) target = $region8
    $region5: #{tpu_custom_call.1} parent=1 // loop_body
      %s20 = ssub.s32 %s15, 1
      %s21 = ssub.s32 %s15, 2
      %s28 = sadd.s32 1, %s23
      %p29 = scmp.ge.s32.totalorder %s28, 1
      %s30 = scalar_select %p29, 0, %s28
      %s31 = sadd.s32 1, %s22
      %s32 = scalar_select %p29, %s31, %s22
      %p33 = scmp.ge.s32.totalorder %s32, 2
      %s34 = scalar_select %p33, 0, %s32
      %s35 = ssub.s32 %s22, %s34
      %s36 = ssub.s32 %s23, %s30
      %s37 = sor.u32 %s35, %s36
      %p38 = scmp.eq.s32.totalorder %s37, 0
      %s40 = sadd.s32 %s39, 1
      %s41 = scalar_select %p38, %s39, %s40
      %p44 = pneg %p38
      %p45 = scmp.eq.s32.totalorder %s15, 1
      %p46 = por %p44, %p45
      %p47 = scmp.ne.s32.totalorder %s39, %s42
      %p48 = scmp.eq.s32.totalorder %s15, 0
      %p49 = por %p47, %p48
      %p50 = scmp.ne.s32.totalorder %s39, %s42
      %p51 = scmp.eq.s32.totalorder %s20, 1
      %p52 = por %p50, %p51
      %p53 = scmp.ne.s32.totalorder %s42, %s43
      %p54 = scmp.eq.s32.totalorder %s20, 0
      %p55 = por %p53, %p54
      %p56 = scmp.ne.s32.totalorder %s42, %s43
      %p57 = scmp.eq.s32.totalorder %s21, 1
      %p58 = por %p56, %p57
      %p60 = scmp.ne.s32.totalorder %s43, %s59
      %p61 = scmp.eq.s32.totalorder %s21, 0
      %p62 = por %p60, %p61
      %s63 = ssub.s32 %s23, %s30
      %p64 = scmp.eq.s32.totalorder %s63, 0
      %s66 = sadd.s32 %s65, 1
      %s67 = scalar_select %p64, %s65, %s66
      %p70 = pneg %p64
      %p71 = scmp.eq.s32.totalorder %s15, 1
      %p72 = por %p70, %p71
      %p73 = scmp.ne.s32.totalorder %s65, %s68
      %p74 = scmp.eq.s32.totalorder %s15, 0
      %p75 = por %p73, %p74
      %p76 = scmp.ne.s32.totalorder %s65, %s68
      %p77 = scmp.eq.s32.totalorder %s20, 1
      %p78 = por %p76, %p77
      %p79 = scmp.ne.s32.totalorder %s68, %s69
      %p80 = scmp.eq.s32.totalorder %s20, 0
      %p81 = por %p79, %p80
      %p82 = scmp.ne.s32.totalorder %s68, %s69
      %p83 = scmp.eq.s32.totalorder %s21, 1
      %p84 = por %p82, %p83
      %p86 = scmp.ne.s32.totalorder %s69, %s85
      %p87 = scmp.eq.s32.totalorder %s21, 0
      %p88 = por %p86, %p87
      %s89 = ssub.s32 %s23, %s30
      %p90 = scmp.eq.s32.totalorder %s89, 0
      %s92 = sadd.s32 %s91, 1
      %s93 = scalar_select %p90, %s91, %s92
      %p96 = pneg %p90
      %p97 = scmp.eq.s32.totalorder %s15, 1
      %p98 = por %p96, %p97
      %p99 = scmp.ne.s32.totalorder %s91, %s94
      %p100 = scmp.eq.s32.totalorder %s15, 0
      %p101 = por %p99, %p100
      %p102 = scmp.ne.s32.totalorder %s91, %s94
      %p103 = scmp.eq.s32.totalorder %s20, 1
      %p104 = por %p102, %p103
      %p105 = scmp.ne.s32.totalorder %s94, %s95
      %p106 = scmp.eq.s32.totalorder %s20, 0
      %p107 = por %p105, %p106
      %p108 = scmp.ne.s32.totalorder %s94, %s95
      %p109 = scmp.eq.s32.totalorder %s21, 1
      %p110 = por %p108, %p109
      %p112 = scmp.ne.s32.totalorder %s95, %s111
      %p113 = scmp.eq.s32.totalorder %s21, 0
      %p114 = por %p112, %p113
      %s115 = ssub.s32 %s22, %s34
      %s116 = ssub.s32 %s23, %s30
      %s117 = sor.u32 %s115, %s116
      %p118 = scmp.eq.s32.totalorder %s117, 0
      %s120 = sadd.s32 %s119, 1
      %s121 = scalar_select %p118, %s119, %s120
      %p124 = pneg %p118
      %p125 = scmp.eq.s32.totalorder %s15, 1
      %p126 = por %p124, %p125
      %p127 = scmp.ne.s32.totalorder %s119, %s122
      %p128 = scmp.eq.s32.totalorder %s15, 0
      %p129 = por %p127, %p128
      %p130 = scmp.ne.s32.totalorder %s119, %s122
      %p131 = scmp.eq.s32.totalorder %s20, 1
      %p132 = por %p130, %p131
      %p133 = scmp.ne.s32.totalorder %s122, %s123
      %p134 = scmp.eq.s32.totalorder %s20, 0
      %p135 = por %p133, %p134
      %p136 = scmp.ne.s32.totalorder %s122, %s123
      %p137 = scmp.eq.s32.totalorder %s21, 1
      %p138 = por %p136, %p137
      %p140 = scmp.ne.s32.totalorder %s123, %s139
      %p141 = scmp.eq.s32.totalorder %s21, 0
      %p142 = por %p140, %p141
      %p143 = scmp.le.s32.totalorder 1, %s15
      %p144 = scmp.lt.s32.totalorder %s15, 3
      %p145 = pnand %p143, %p144
      %p146 = pneg %p145
      // Predicated region
      $region9: #{tpu_custom_call.1} parent=5 // pred_check
        _
      $region10: #{tpu_custom_call.1} parent=5 // pred_check_branch
        %148 = sbr.rel (%p145) target = $region12
      $region11: #{tpu_custom_call.1} parent=5 // pred_region
        %s149 = ssub.s32 %s15, 1
        // Predicated region
        $region13: #{tpu_custom_call.1} parent=11 // pred_check
          %p150 = pneg %p81
        $region14: #{tpu_custom_call.1} parent=11 // pred_check_branch
          %152 = sbr.rel (%p150) target = $region16
        $region15: #{tpu_custom_call.1} parent=11 // pred_region
          %p153 = scmp.lt.s32.totalorder %s25, 0
          %s154 = scalar_select %p153, %s25, 0
          %s155 = smul.addr %s154, 4
          %s156 = scalar_lea.vmem %s1, %s155
        $region16: #{tpu_custom_call.1} parent=11 // pred_fallthru
          _
        // Predicated region
        $region17: #{tpu_custom_call.1} parent=11 // pred_check
          %p157 = pneg %p107
        $region18: #{tpu_custom_call.1} parent=11 // pred_check_branch
          %159 = sbr.rel (%p157) target = $region20
        $region19: #{tpu_custom_call.1} parent=11 // pred_region
          %p160 = scmp.lt.s32.totalorder %s25, 0
          %s161 = scalar_select %p160, %s25, 0
          %s162 = smul.addr %s161, 4
          %s163 = scalar_lea.vmem %s2, %s162
        $region20: #{tpu_custom_call.1} parent=11 // pred_fallthru
          _
      $region12: #{tpu_custom_call.1} parent=5 // pred_fallthru
        _
      %p164 = scmp.lt.s32.totalorder %s15, 2
      // Predicated region
      $region21: #{tpu_custom_call.1} parent=5 // pred_check
        %p165 = pneg %p164
      $region22: #{tpu_custom_call.1} parent=5 // pred_check_branch
        %167 = sbr.rel (%p165) target = $region24
      $region23: #{tpu_custom_call.1} parent=5 // pred_region
        // Predicated region
        $region25: #{tpu_custom_call.1} parent=23 // pred_check
          %p168 = pneg %p49
        $region26: #{tpu_custom_call.1} parent=23 // pred_check_branch
          %170 = sbr.rel (%p168) target = $region28
        $region27: #{tpu_custom_call.1} parent=23 // pred_region
          %s171 = sand.u32 %s39, 1
          %s172 = scalar_lea.sflag [#allocation4], %s171
          %s173 = sand.u32 %s39, 1
          %s174 = smul.addr %s173, 4
          %s175 = scalar_lea.vmem [#allocation3], %s174
          %s177 = ssub.s32 64, 64
          %178 = vsyncadd %s172, %s177
          %s179 = sadd.s32 %s23, %s22
          %s180 = smul.addr %s179, 64
          %s181 = scalar_lea.hbm %s0, %s180
          %s183 = sshll.u32 %s175, 4
          %s184 = int_to_ptr.vmem [resolvable:$true] %s183
          %186 = dma.hbm_to_vmem [thread:$0]  %s181, 64, %s184, %s172
        $region28: #{tpu_custom_call.1} parent=23 // pred_fallthru
          _
      $region24: #{tpu_custom_call.1} parent=5 // pred_fallthru
        _
      %p187 = scmp.le.s32.totalorder 1, %s15
      %p188 = scmp.lt.s32.totalorder %s15, 3
      %p189 = pnand %p187, %p188
      %p190 = pneg %p189
      // Predicated region
      $region29: #{tpu_custom_call.1} parent=5 // pred_check
        _
      $region30: #{tpu_custom_call.1} parent=5 // pred_check_branch
        %192 = sbr.rel (%p189) target = $region32
      $region31: #{tpu_custom_call.1} parent=5 // pred_region
        %s193 = ssub.s32 %s15, 1
        %s194 = sand.u32 %s42, 1
        %s195 = scalar_lea.sflag [#allocation4], %s194
        %s196 = sand.u32 %s42, 1
        %s197 = smul.addr %s196, 4
        %s198 = scalar_lea.vmem [#allocation3], %s197
        // Predicated region
        $region33: #{tpu_custom_call.1} parent=31 // pred_check
          %p199 = pneg %p55
        $region34: #{tpu_custom_call.1} parent=31 // pred_check_branch
          %201 = sbr.rel (%p199) target = $region36
        $region35: #{tpu_custom_call.1} parent=31 // pred_region
          %202 = dma.done %s195, 64
        $region36: #{tpu_custom_call.1} parent=31 // pred_fallthru
          _
        %s203 = sand.u32 %s42, 1
        %s204 = scalar_lea.sflag [#allocation4], %s203
        %s205 = sand.u32 %s42, 1
        %s206 = smul.addr %s205, 4
        %s207 = scalar_lea.vmem [#allocation3], %s206
        %p208 = pneg %p55
        %p209 = pneg %p52
        %p210 = scmp.lt.s32.totalorder %s25, 0
        %s211 = scalar_select %p210, %s25, 0
        %s212 = smul.addr %s211, 4
        %s213 = scalar_lea.vmem %s1, %s212
        %p214 = pneg %p81
        %p215 = pneg %p78
        %p216 = scmp.lt.s32.totalorder %s25, 0
        %s217 = scalar_select %p216, %s25, 0
        %s218 = smul.addr %s217, 4
        %s219 = scalar_lea.vmem %s2, %s218
        %p220 = pneg %p107
        %p221 = pneg %p104
        %p222 = pneg %p135
        %p223 = pneg %p132
        %s224 = sand.u32 %s122, 1
        %s225 = scalar_lea.sflag [#allocation5], %s224
        %s226 = sand.u32 %s122, 1
        %s227 = smul.addr %s226, 4
        %s228 = scalar_lea.vmem [#allocation6], %s227
        %p229 = scmp.lt.s32.totalorder %s25, 0
        %s230 = scalar_select %p229, %s25, 0
        %s231 = smul.addr %s230, 4
        %s232 = scalar_lea.vmem %s1, %s231
        %p233 = scmp.lt.s32.totalorder %s25, 0
        %s234 = scalar_select %p233, %s25, 0
        %s235 = smul.addr %s234, 4
        %s236 = scalar_lea.vmem %s2, %s235
        %237 = vst [vmem:[#allocation2] sm:$0xf] 0.0
        %vm238 = vcmask 134272
        %239 = vst.msk [vmem:[#allocation2 + $0x4] sm:$0xf] %vm238, 0.0
        %v240 = vld [vmem:[%s198] sm:$0xf]
        %vm241 = vcmask 125952
        %242 = vst.msk [vmem:[#allocation2 + $0x4] sm:$0xf] %vm241, %v240
        %v243 = vld [vmem:[%s232] sm:$0xf]
        %v244 = vld [vmem:[%s236] sm:$0xf]
        %246 = vset.pattern.permute.xlu0 0
        %247 = vperm.xlu0 %246, %v244
        %v248 = vpop.permute.xlu0 %247
        %v250 = vld [vmem:[#allocation2] sm:$0xff]
        %252 = vset.pattern.permute.xlu0 0
        %253 = vperm.xlu0 %252, %v243
        %v254 = vpop.permute.xlu0 %253
        %v257 = vcombine.high %v250, %v250
        %258 = vrot.lane.b32.xlu0 %v250, 1
        %v259 = vpop.permute.xlu0 %258
        %260 = vrot.lane.b32.xlu0 %v257, 1
        %v261 = vpop.permute.xlu0 %260
        %vm262 = vcmask 7168
        %v263 = vsel %vm262, %v259, %v261
        %v265 = vmul.f32 %v254, %v263
        %v266 = vadd.f32 %v248, %v265
        %v267 = vld [vmem:[#allocation2 + $0x4] sm:$0xf]
        %268 = vset.pattern.permute.xlu0 1
        %269 = vperm.xlu0 %268, %v243
        %v270 = vpop.permute.xlu0 %269
        %v272 = vmul.f32 %v270, %v267
        %v273 = vadd.f32 %v266, %v272
        %274 = vset.pattern.permute.xlu0 2
        %275 = vperm.xlu0 %274, %v243
        %v276 = vpop.permute.xlu0 %275
        %279 = vrot.lane.b32.xlu0 %v267, 127
        %v280 = vpop.permute.xlu0 %279
        %v282 = vmul.f32 %v276, %v280
        %v283 = vadd.f32 %v273, %v282
        %284 = vst.msk [vmem:[%s228] sm:$0xf] %vm241, %v283
        %s285 = sand.u32 %s122, 1
        %s286 = scalar_lea.sflag [#allocation5], %s285
        %s287 = sand.u32 %s122, 1
        %s288 = smul.addr %s287, 4
        %s289 = scalar_lea.vmem [#allocation6], %s288
        // Predicated region
        $region37: #{tpu_custom_call.1} parent=31 // pred_check
          %p290 = pneg %p132
        $region38: #{tpu_custom_call.1} parent=31 // pred_check_branch
          %292 = sbr.rel (%p290) target = $region40
        $region39: #{tpu_custom_call.1} parent=31 // pred_region
          %s294 = ssub.s32 64, 64
          %295 = vsyncadd %s286, %s294
          %s296 = sadd.s32 %s25, %s24
          %s297 = smul.addr %s296, 64
          %s298 = scalar_lea.hbm %s3, %s297
          %s300 = sshll.u32 %s289, 4
          %s301 = int_to_ptr.vmem [resolvable:$true] %s300
          %303 = dma.vmem_to_hbm [thread:$0]  %s301, 64, %s298, %s286
        $region40: #{tpu_custom_call.1} parent=31 // pred_fallthru
          _
      $region32: #{tpu_custom_call.1} parent=5 // pred_fallthru
        _
      %p304 = scmp.le.s32.totalorder 2, %s15
      // Predicated region
      $region41: #{tpu_custom_call.1} parent=5 // pred_check
        %p305 = pneg %p304
      $region42: #{tpu_custom_call.1} parent=5 // pred_check_branch
        %307 = sbr.rel (%p305) target = $region44
      $region43: #{tpu_custom_call.1} parent=5 // pred_region
        %s308 = ssub.s32 %s15, 2
        // Predicated region
        $region45: #{tpu_custom_call.1} parent=43 // pred_check
          %p309 = pneg %p138
        $region46: #{tpu_custom_call.1} parent=43 // pred_check_branch
          %311 = sbr.rel (%p309) target = $region48
        $region47: #{tpu_custom_call.1} parent=43 // pred_region
          %s312 = sand.u32 %s123, 1
          %s313 = scalar_lea.sflag [#allocation5], %s312
          %s314 = sand.u32 %s123, 1
          %s315 = smul.addr %s314, 4
          %s316 = scalar_lea.vmem [#allocation6], %s315
          %317 = dma.done %s313, 64
        $region48: #{tpu_custom_call.1} parent=43 // pred_fallthru
          _
      $region44: #{tpu_custom_call.1} parent=5 // pred_fallthru
        _
    $region6: #{tpu_custom_call.1} parent=1 // loop_footer
      %s19 = sadd.s32 1, %s15
    $region7: #{tpu_custom_call.1} parent=1 // loop_footer_branch
      %14 = sbr.rel target = $region3
    $region8: #{tpu_custom_call.1} parent=1 // loop_exit
      _
    %318 = vsyncpa [#allocation4], 1
    %s319 = scalar_lea.sflag [#allocation4], 1
    %320 = vsyncpa %s319, 1
    %321 = vsyncpa [#allocation5], 1
    %s322 = scalar_lea.sflag [#allocation5], 1
    %323 = vsyncpa %s322, 1

</llo_original>
